<compile_context>
chip_gen: v6e
topology: v6e:2x2x1
jax: 0.10.0
libtpu: 0.0.40
codegen_flags: <defaults>
</compile_context>

<pallas_src>
import jax
import jax.numpy as jnp
from jax.experimental import pallas as pl
from jax.experimental.pallas import tpu as pltpu


def _round_up(x, m):
    return ((x + m - 1) // m) * m


def _pool_classify_kernel(x_ref, w_ref, b_ref, o_ref, acc_ref):
    """grid = (N-tiles [parallel], HW-tiles [arbitrary / reduction]).

    x_ref  : (TN, C, THW)  streaming activation tile (native dtype)
    w_ref  : (C, K_pad)    classifier weight, 1/HW pooling scale pre-folded
    b_ref  : (1, K_pad)    bias
    o_ref  : (TN, K_pad)   output tile (same block across the HW axis)
    acc_ref: (TN, C) f32   pooled-sum accumulator, persists across HW steps
    """
    hw_idx = pl.program_id(1)

    @pl.when(hw_idx == 0)
    def _():
        acc_ref[...] = jnp.zeros_like(acc_ref)

    # Partial sum over the lane (HW) axis of this tile; per-tile f32 promote
    # (required on v5e VPU; keeps the dominant HBM stream in the input dtype).
    acc_ref[...] += jnp.sum(x_ref[...].astype(jnp.float32), axis=-1)

    @pl.when(hw_idx == pl.num_programs(1) - 1)
    def _():
        pooled = acc_ref[...]                                 # (TN, C) f32
        out = jnp.dot(pooled, w_ref[...].astype(jnp.float32),
                      preferred_element_type=jnp.float32)     # (TN, K_pad)
        out = out + b_ref[...].astype(jnp.float32)
        o_ref[...] = out.astype(o_ref.dtype)


def model_part_forward(x_nchw, weight_kc, bias_k, *, tn_tile=None, thw_tile=None):
    """x_nchw: (N, C, H, W); weight_kc: (K, C) torch Linear convention; bias_k: (K,)."""
    N, C, H, W = x_nchw.shape
    K = weight_kc.shape[0]
    HW = H * W
    itemsize = jnp.dtype(x_nchw.dtype).itemsize

    # ---------------- tile sizing (VMEM-safe on v5e/v6e/v7x) ----------------
    X_TILE_BUDGET = 8 << 20  # bytes per x input buffer (Pallas double-buffers it)

    if tn_tile is None:
        # Keep TN*C*128*itemsize under budget even at the minimum lane tile.
        tn_cap = max(8, (X_TILE_BUDGET // (C * 128 * itemsize)) // 8 * 8)
        tn_tile = min(_round_up(N, 8), 256, tn_cap)
    TN = tn_tile
    N_pad = _round_up(N, TN)

    if thw_tile is None:
        max_thw = max(128, (X_TILE_BUDGET // (TN * C * itemsize)) // 128 * 128)
        # Lane axis: multiple of 128, prefer >=512 for DMA/roofline, cap at 1024.
        thw_tile = max(128, min(_round_up(HW, 128), 1024, max_thw))
    THW = thw_tile
    HW_pad = _round_up(HW, THW)

    K_pad = _round_up(K, 128)  # lane-dense output stores (no masked vst)

    # ---------------- wrapper-side layout plumbing (reshape / pad / fold) ---
    x3 = x_nchw.reshape(N, C, HW)
    x3 = jnp.pad(x3, ((0, N_pad - N), (0, 0), (0, HW_pad - HW)))

    # Fold 1/(H*W) into the static classifier weight: kernel only sums + matmuls.
    # (Zero-padded HW columns contribute nothing to the sum, so this is exact.)
    w_ck = (weight_kc.astype(jnp.float32).T * (1.0 / HW)).astype(weight_kc.dtype)
    w_ck = jnp.pad(w_ck, ((0, 0), (0, K_pad - K)))
    b_1k = jnp.pad(bias_k.reshape(1, K), ((0, 0), (0, K_pad - K)))

    grid = (N_pad // TN, HW_pad // THW)

    cost = pl.CostEstimate(
        flops=N * C * HW + 2 * N * C * K,
        transcendentals=0,
        bytes_accessed=(x3.size * itemsize
                        + w_ck.size * jnp.dtype(w_ck.dtype).itemsize
                        + b_1k.size * jnp.dtype(b_1k.dtype).itemsize
                        + N_pad * K_pad * itemsize),
    )

    out_pad = pl.pallas_call(
        _pool_classify_kernel,
        out_shape=jax.ShapeDtypeStruct((N_pad, K_pad), x_nchw.dtype),
        grid_spec=pltpu.PrefetchScalarGridSpec(
            num_scalar_prefetch=0,
            grid=grid,
            in_specs=[
                pl.BlockSpec((TN, C, THW), lambda i, j: (i, 0, j)),
                pl.BlockSpec((C, K_pad), lambda i, j: (0, 0)),
                pl.BlockSpec((1, K_pad), lambda i, j: (0, 0)),
            ],
            out_specs=pl.BlockSpec((TN, K_pad), lambda i, j: (i, 0)),
            scratch_shapes=[pltpu.VMEM((TN, C), jnp.float32)],
        ),
        compiler_params=pltpu.CompilerParams(
            dimension_semantics=("parallel", "arbitrary"),
            vmem_limit_bytes=32 << 20,  # fits v7x's 64 MiB physical VMEM with headroom
        ),
        cost_estimate=cost,
    )(x3, w_ck, b_1k)

    return out_pad[:N, :K]


if __name__ == "__main__":
    def ref_forward(x, w, b):
        n, c = x.shape[:2]
        return jnp.mean(x.reshape(n, c, -1), axis=-1) @ w.T + b

    # Case 1: small shapes implied by the module (2, 32, 8, 8) -> Linear(32, 16).
    N, C, H, W, K = 2, 32, 8, 8, 16
    kx, kw, kb = jax.random.split(jax.random.PRNGKey(0), 3)
    x = jax.random.normal(kx, (N, C, H, W), dtype=jnp.float32)
    weight = jax.random.normal(kw, (K, C), dtype=jnp.float32) * 0.05
    bias = jax.random.normal(kb, (K,), dtype=jnp.float32) * 0.01

    out = jax.block_until_ready(model_part_forward(x, weight, bias))
    ref = ref_forward(x, weight, bias)
    assert out.shape == (N, K)
    assert jnp.allclose(out, ref, atol=1e-5, rtol=1e-5)

    # Case 2: force a multi-tile grid (2 N-tiles x 2 HW-steps) to exercise the
    # accumulator + pl.when finalize path, still at small size.
    N2, C2, H2, W2, K2 = 10, 32, 16, 16, 16
    k2x, k2w, k2b = jax.random.split(jax.random.PRNGKey(1), 3)
    x2 = jax.random.normal(k2x, (N2, C2, H2, W2), dtype=jnp.float32)
    w2 = jax.random.normal(k2w, (K2, C2), dtype=jnp.float32) * 0.05
    b2 = jax.random.normal(k2b, (K2,), dtype=jnp.float32) * 0.01

    out2 = jax.block_until_ready(
        model_part_forward(x2, w2, b2, tn_tile=8, thw_tile=128))
    ref2 = ref_forward(x2, w2, b2)
    assert out2.shape == (N2, K2)
    assert jnp.allclose(out2, ref2, atol=1e-4, rtol=1e-4)

    print("KERNEL_OK")
</pallas_src>

<mosaic_0001>
module attributes {stable_mosaic.version = 11 : i64} {
  func.func @_pool_classify_kernel(%arg0: i32, %arg1: i32, %arg2: memref<8x32x128xf32, #tpu.memory_space<vmem>>, %arg3: memref<32x128xf32, #tpu.memory_space<vmem>>, %arg4: memref<1x128xf32, #tpu.memory_space<vmem>>, %arg5: memref<8x128xf32, #tpu.memory_space<vmem>>, %arg6: memref<8x32xf32, #tpu.memory_space<vmem>>) attributes {dimension_semantics = [#tpu.dimension_semantics<parallel>, #tpu.dimension_semantics<arbitrary>], iteration_bounds = array<i64: 1, 1>, scalar_prefetch = 0 : i64, scratch_operands = 1 : i64, tpu.core_type = #tpu.core_type<tc>, window_params = [{transform_indices = @transform_0, window_bounds = array<i64: 8, 32, 128>}, {pipeline_mode = #tpu.pipeline_mode<synchronous>, transform_indices = @transform_1, window_bounds = array<i64: 32, 128>}, {pipeline_mode = #tpu.pipeline_mode<synchronous>, transform_indices = @transform_2, window_bounds = array<i64: 1, 128>}, {transform_indices = @transform_3, window_bounds = array<i64: 8, 128>}]} {
    %c0_i32 = arith.constant 0 : i32
    %0 = arith.cmpi eq, %arg1, %c0_i32 : i32
    %1 = arith.extui %0 : i1 to i32
    %c0_i32_0 = arith.constant 0 : i32
    %2 = arith.cmpi ne, %1, %c0_i32_0 : i32
    scf.if %2 {
      %cst_9 = arith.constant 0.000000e+00 : f32
      %11 = vector.broadcast %cst_9 : f32 to vector<8x32xf32>
      %c0_10 = arith.constant 0 : index
      %c0_11 = arith.constant 0 : index
      %12 = vector.load %arg6[%c0_10, %c0_11] : memref<8x32xf32, #tpu.memory_space<vmem>>, vector<8x32xf32>
      tpu.vector_store %arg6[%c0_10, %c0_11], %11 {strides = array<i32>} : memref<8x32xf32, #tpu.memory_space<vmem>>, vector<8x32xf32>,
    } else {
    }
    %c0 = arith.constant 0 : index
    %c0_1 = arith.constant 0 : index
    %3 = vector.load %arg6[%c0, %c0_1] : memref<8x32xf32, #tpu.memory_space<vmem>>, vector<8x32xf32>
    %c0_2 = arith.constant 0 : index
    %c0_3 = arith.constant 0 : index
    %c0_4 = arith.constant 0 : index
    %4 = vector.load %arg2[%c0_2, %c0_3, %c0_4] : memref<8x32x128xf32, #tpu.memory_space<vmem>>, vector<8x32x128xf32>
    %cst = arith.constant dense<0.000000e+00> : vector<8x32xf32>
    %5 = vector.multi_reduction <add>, %4, %cst [2] : vector<8x32x128xf32> to vector<8x32xf32>
    %6 = arith.addf %3, %5 : vector<8x32xf32>
    %c0_5 = arith.constant 0 : index
    %c0_6 = arith.constant 0 : index
    %7 = vector.load %arg6[%c0_5, %c0_6] : memref<8x32xf32, #tpu.memory_space<vmem>>, vector<8x32xf32>
    tpu.vector_store %arg6[%c0_5, %c0_6], %6 {strides = array<i32>} : memref<8x32xf32, #tpu.memory_space<vmem>>, vector<8x32xf32>,
    %c0_i32_7 = arith.constant 0 : i32
    %8 = arith.cmpi eq, %arg1, %c0_i32_7 : i32
    %9 = arith.extui %8 : i1 to i32
    %c0_i32_8 = arith.constant 0 : i32
    %10 = arith.cmpi ne, %9, %c0_i32_8 : i32
    scf.if %10 {
      %c0_9 = arith.constant 0 : index
      %c0_10 = arith.constant 0 : index
      %11 = vector.load %arg6[%c0_9, %c0_10] : memref<8x32xf32, #tpu.memory_space<vmem>>, vector<8x32xf32>
      %c0_11 = arith.constant 0 : index
      %c0_12 = arith.constant 0 : index
      %12 = vector.load %arg3[%c0_11, %c0_12] : memref<32x128xf32, #tpu.memory_space<vmem>>, vector<32x128xf32>
      %cst_13 = arith.constant dense<0.000000e+00> : vector<8x128xf32>
      %13 = tpu.matmul %11, %12, %cst_13 {dimension_numbers = #tpu.dot_dimension_numbers<[1], [0], [0], [1], [0, 0, 1, 1], [], []>} : vector<8x32xf32>, vector<32x128xf32>, vector<8x128xf32> -> vector<8x128xf32>
      %c0_14 = arith.constant 0 : index
      %c0_15 = arith.constant 0 : index
      %14 = vector.load %arg4[%c0_14, %c0_15] : memref<1x128xf32, #tpu.memory_space<vmem>>, vector<1x128xf32>
      %15 = vector.broadcast %14 : vector<1x128xf32> to vector<8x128xf32>
      %16 = arith.addf %13, %15 : vector<8x128xf32>
      %c0_16 = arith.constant 0 : index
      %c0_17 = arith.constant 0 : index
      %17 = vector.load %arg5[%c0_16, %c0_17] : memref<8x128xf32, #tpu.memory_space<vmem>>, vector<8x128xf32>
      tpu.vector_store %arg5[%c0_16, %c0_17], %16 {strides = array<i32>} : memref<8x128xf32, #tpu.memory_space<vmem>>, vector<8x128xf32>,
    } else {
    }
    return
  }
  func.func @transform_0(%arg0: i32, %arg1: i32) -> (i32, i32, i32) {
    %c0_i32 = arith.constant 0 : i32
    %c0_i32_0 = arith.constant 0 : i32
    return %arg0, %c0_i32, %arg1 : i32, i32, i32
  }
  func.func @transform_1(%arg0: i32, %arg1: i32) -> (i32, i32) {
    %c0_i32 = arith.constant 0 : i32
    %c0_i32_0 = arith.constant 0 : i32
    %c0_i32_1 = arith.constant 0 : i32
    return %c0_i32, %c0_i32_0 : i32, i32
  }
  func.func @transform_2(%arg0: i32, %arg1: i32) -> (i32, i32) {
    %c0_i32 = arith.constant 0 : i32
    %c0_i32_0 = arith.constant 0 : i32
    %c0_i32_1 = arith.constant 0 : i32
    return %c0_i32, %c0_i32_0 : i32, i32
  }
  func.func @transform_3(%arg0: i32, %arg1: i32) -> (i32, i32) {
    %c0_i32 = arith.constant 0 : i32
    %c0_i32_0 = arith.constant 0 : i32
    return %arg0, %c0_i32 : i32, i32
  }
}

</mosaic_0001>

<llo_original>
// kernel: tpu_custom_call.1
$region0: #{tpu_custom_call.1}
  #allocation0 [shape = 'u32[]', space=smem, size = 0x4, offset = 0x4, fixed_abs, tag = 'smem constant byte address 0x4 - core index']
  #allocation1 [shape = 'u32[144,128]{1,0:T(1,128)}', space=vmem, size = 0x12000, scoped, tag = 'internal scratch']
  #allocation2 [shape = 'f32[8,32]{1,0:T(8,128)}', space=vmem, size = 0x1000, scoped, tag = 'scratch operand']
  %s0 = inlined_call_operand.hbm [shape: f32[8,32,128], index: 0, kind: input, shape index: {}]
  %s1 = inlined_call_operand.hbm [shape: f32[32,128], index: 1, kind: input, shape index: {}]
  %s2 = inlined_call_operand.vmem [shape: f32[1,128], index: 2, kind: input, shape index: {}]
  %s3 = inlined_call_operand.hbm [shape: f32[8,128], index: 3, kind: output, shape index: {}]
  %s4 = sld [smem:[#allocation0]]
  $region38: #{tpu_custom_call.1} parent=0
    _
  %s6 = ssub.s32 1, %s4
  %s7 = scalar_select 0, %s6, %s4
  $region1: #{tpu_custom_call.1} parent=0
    #allocation3 [shape = 'u8[131072]{0}', space=vmem, size = 0x20000, scoped, tag = 'input window, operand 0, single buffered']
    #allocation4 [shape = 's32[1]{0}', space=sflag, size = 0x4, scoped, tag = 'scoped memory for tpu_custom_call.1']
    #allocation5 [shape = 's32[1]{0}', space=sflag, size = 0x4, scoped, tag = 'scoped memory for tpu_custom_call.1']
    #allocation6 [shape = 'u8[16384]{0}', space=vmem, size = 0x4000, scoped, tag = 'input window, operand 1, single buffered']
    #allocation7 [shape = 's32[1]{0}', space=sflag, size = 0x4, scoped, tag = 'scoped memory for tpu_custom_call.1']
    #allocation8 [shape = 'u8[4096]{0}', space=vmem, size = 0x1000, scoped, tag = 'output window, operand 0, single buffered']
    %8 = vsyncpa [#allocation4], 0
    %9 = vsyncpa [#allocation7], 0
    %10 = vsyncpa [#allocation5], 0
    // Predicated region
    $region2: #{tpu_custom_call.1} parent=1 // pred_check
      _
    $region3: #{tpu_custom_call.1} parent=1 // pred_check_branch
      %12 = sbr.rel (0) target = $region5
    $region4: #{tpu_custom_call.1} parent=1 // pred_region
      %s14 = ssub.s32 4096, 4096
      %15 = vsyncadd [#allocation4], %s14
      %s16 = sshll.u32 [#allocation3], 4
      %s17 = int_to_ptr.vmem [resolvable:$true] %s16
      %22 = dma.hbm_to_vmem [thread:$0]  %s0, 4096, %s17, [#allocation4], 128, 128, 8
    $region5: #{tpu_custom_call.1} parent=1 // pred_fallthru
      _
    // Predicated region
    $region6: #{tpu_custom_call.1} parent=1 // pred_check
      _
    $region7: #{tpu_custom_call.1} parent=1 // pred_check_branch
      %24 = sbr.rel (0) target = $region9
    $region8: #{tpu_custom_call.1} parent=1 // pred_region
      %s26 = ssub.s32 512, 512
      %27 = vsyncadd [#allocation7], %s26
      %s28 = sshll.u32 [#allocation6], 4
      %s29 = int_to_ptr.vmem [resolvable:$true] %s28
      %34 = dma.hbm_to_vmem [thread:$0]  %s1, 512, %s29, [#allocation7], 128, 128, 8
    $region9: #{tpu_custom_call.1} parent=1 // pred_fallthru
      _
    // Predicated region
    $region10: #{tpu_custom_call.1} parent=1 // pred_check
      _
    $region11: #{tpu_custom_call.1} parent=1 // pred_check_branch
      %36 = sbr.rel (0) target = $region13
    $region12: #{tpu_custom_call.1} parent=1 // pred_region
      _
    $region13: #{tpu_custom_call.1} parent=1 // pred_fallthru
      _
    // Predicated region
    $region14: #{tpu_custom_call.1} parent=1 // pred_check
      _
    $region15: #{tpu_custom_call.1} parent=1 // pred_check_branch
      %38 = sbr.rel (0) target = $region17
    $region16: #{tpu_custom_call.1} parent=1 // pred_region
      %39 = dma.done [#allocation4], 4096
    $region17: #{tpu_custom_call.1} parent=1 // pred_fallthru
      _
    // Predicated region
    $region18: #{tpu_custom_call.1} parent=1 // pred_check
      _
    $region19: #{tpu_custom_call.1} parent=1 // pred_check_branch
      %41 = sbr.rel (0) target = $region21
    $region20: #{tpu_custom_call.1} parent=1 // pred_region
      %42 = dma.done [#allocation7], 512
    $region21: #{tpu_custom_call.1} parent=1 // pred_fallthru
      _
    %p43 = scmp.eq.s32.totalorder 0, 0
    // Predicated region
    $region22: #{tpu_custom_call.1} parent=1 // pred_check
      %p44 = pneg %p43
    $region23: #{tpu_custom_call.1} parent=1 // pred_check_branch
      %46 = sbr.rel (%p44) target = $region25
    $region24: #{tpu_custom_call.1} parent=1 // pred_region
      %vm47 = vcmask 261120
      %48 = vst.msk [vmem:[#allocation2] sm:$0xff] %vm47, 0.0
    $region25: #{tpu_custom_call.1} parent=1 // pred_fallthru
      _
    %v49 = vld [vmem:[#allocation2] sm:$0xff]
    %v50 = vld [vmem:[#allocation3] sm:$0xff]
    %v51 = vld [vmem:[#allocation3 + $0x8] sm:$0xff]
    %v52 = vld [vmem:[#allocation3 + $0x10] sm:$0xff]
    %v53 = vld [vmem:[#allocation3 + $0x18] sm:$0xff]
    %v54 = vld [vmem:[#allocation3 + $0x20] sm:$0xff]
    %v55 = vld [vmem:[#allocation3 + $0x28] sm:$0xff]
    %v56 = vld [vmem:[#allocation3 + $0x30] sm:$0xff]
    %v57 = vld [vmem:[#allocation3 + $0x38] sm:$0xff]
    %v58 = vld [vmem:[#allocation3 + $0x40] sm:$0xff]
    %v59 = vld [vmem:[#allocation3 + $0x48] sm:$0xff]
    %v60 = vld [vmem:[#allocation3 + $0x50] sm:$0xff]
    %v61 = vld [vmem:[#allocation3 + $0x58] sm:$0xff]
    %v62 = vld [vmem:[#allocation3 + $0x60] sm:$0xff]
    %v63 = vld [vmem:[#allocation3 + $0x68] sm:$0xff]
    %v64 = vld [vmem:[#allocation3 + $0x70] sm:$0xff]
    %v65 = vld [vmem:[#allocation3 + $0x78] sm:$0xff]
    %v66 = vld [vmem:[#allocation3 + $0x80] sm:$0xff]
    %v67 = vld [vmem:[#allocation3 + $0x88] sm:$0xff]
    %v68 = vld [vmem:[#allocation3 + $0x90] sm:$0xff]
    %v69 = vld [vmem:[#allocation3 + $0x98] sm:$0xff]
    %v70 = vld [vmem:[#allocation3 + $0xa0] sm:$0xff]
    %v71 = vld [vmem:[#allocation3 + $0xa8] sm:$0xff]
    %v72 = vld [vmem:[#allocation3 + $0xb0] sm:$0xff]
    %v73 = vld [vmem:[#allocation3 + $0xb8] sm:$0xff]
    %v74 = vld [vmem:[#allocation3 + $0xc0] sm:$0xff]
    %v75 = vld [vmem:[#allocation3 + $0xc8] sm:$0xff]
    %v76 = vld [vmem:[#allocation3 + $0xd0] sm:$0xff]
    %v77 = vld [vmem:[#allocation3 + $0xd8] sm:$0xff]
    %v78 = vld [vmem:[#allocation3 + $0xe0] sm:$0xff]
    %v79 = vld [vmem:[#allocation3 + $0xe8] sm:$0xff]
    %v80 = vld [vmem:[#allocation3 + $0xf0] sm:$0xff]
    %v81 = vld [vmem:[#allocation3 + $0xf8] sm:$0xff]
    %82 = vadd.xlane.f32.xlu0 %v50
    %v83 = vpop.xlane.xlu0 %82
    %84 = vadd.xlane.f32.xlu0 %v51
    %v85 = vpop.xlane.xlu0 %84
    %86 = vadd.xlane.f32.xlu0 %v52
    %v87 = vpop.xlane.xlu0 %86
    %88 = vadd.xlane.f32.xlu0 %v53
    %v89 = vpop.xlane.xlu0 %88
    %90 = vadd.xlane.f32.xlu0 %v54
    %v91 = vpop.xlane.xlu0 %90
    %92 = vadd.xlane.f32.xlu0 %v55
    %v93 = vpop.xlane.xlu0 %92
    %94 = vadd.xlane.f32.xlu0 %v56
    %v95 = vpop.xlane.xlu0 %94
    %96 = vadd.xlane.f32.xlu0 %v57
    %v97 = vpop.xlane.xlu0 %96
    %98 = vadd.xlane.f32.xlu0 %v58
    %v99 = vpop.xlane.xlu0 %98
    %100 = vadd.xlane.f32.xlu0 %v59
    %v101 = vpop.xlane.xlu0 %100
    %102 = vadd.xlane.f32.xlu0 %v60
    %v103 = vpop.xlane.xlu0 %102
    %104 = vadd.xlane.f32.xlu0 %v61
    %v105 = vpop.xlane.xlu0 %104
    %106 = vadd.xlane.f32.xlu0 %v62
    %v107 = vpop.xlane.xlu0 %106
    %108 = vadd.xlane.f32.xlu0 %v63
    %v109 = vpop.xlane.xlu0 %108
    %110 = vadd.xlane.f32.xlu0 %v64
    %v111 = vpop.xlane.xlu0 %110
    %112 = vadd.xlane.f32.xlu0 %v65
    %v113 = vpop.xlane.xlu0 %112
    %114 = vadd.xlane.f32.xlu0 %v66
    %v115 = vpop.xlane.xlu0 %114
    %116 = vadd.xlane.f32.xlu0 %v67
    %v117 = vpop.xlane.xlu0 %116
    %118 = vadd.xlane.f32.xlu0 %v68
    %v119 = vpop.xlane.xlu0 %118
    %120 = vadd.xlane.f32.xlu0 %v69
    %v121 = vpop.xlane.xlu0 %120
    %122 = vadd.xlane.f32.xlu0 %v70
    %v123 = vpop.xlane.xlu0 %122
    %124 = vadd.xlane.f32.xlu0 %v71
    %v125 = vpop.xlane.xlu0 %124
    %126 = vadd.xlane.f32.xlu0 %v72
    %v127 = vpop.xlane.xlu0 %126
    %128 = vadd.xlane.f32.xlu0 %v73
    %v129 = vpop.xlane.xlu0 %128
    %130 = vadd.xlane.f32.xlu0 %v74
    %v131 = vpop.xlane.xlu0 %130
    %132 = vadd.xlane.f32.xlu0 %v75
    %v133 = vpop.xlane.xlu0 %132
    %134 = vadd.xlane.f32.xlu0 %v76
    %v135 = vpop.xlane.xlu0 %134
    %136 = vadd.xlane.f32.xlu0 %v77
    %v137 = vpop.xlane.xlu0 %136
    %138 = vadd.xlane.f32.xlu0 %v78
    %v139 = vpop.xlane.xlu0 %138
    %140 = vadd.xlane.f32.xlu0 %v79
    %v141 = vpop.xlane.xlu0 %140
    %142 = vadd.xlane.f32.xlu0 %v80
    %v143 = vpop.xlane.xlu0 %142
    %144 = vadd.xlane.f32.xlu0 %v81
    %v145 = vpop.xlane.xlu0 %144
    %v178 = vlaneseq
    %v179 = vand.u32 %v178, 127
    %v180 = vlaneseq
    %v181 = vshrl.u32 %v180, 7
    %v182 = vsub.s32 %v179, %v181
    %v183 = vrot.slane %v83, %v182
    %v184 = vadd.s32 %v179, 4294967288
    %v185 = vlaneseq
    %v186 = vshrl.u32 %v185, 7
    %v187 = vsub.s32 %v184, %v186
    %v188 = vrot.slane %v85, %v187
    %vm189 = vcmask 130112
    %v190 = vsel %vm189, %v188, %v183
    %v191 = vadd.s32 %v179, 4294967280
    %v192 = vlaneseq
    %v193 = vshrl.u32 %v192, 7
    %v194 = vsub.s32 %v191, %v193
    %v195 = vrot.slane %v87, %v194
    %vm196 = vcmask 195712
    %v197 = vsel %vm196, %v195, %v190
    %v198 = vadd.s32 %v179, 4294967272
    %v199 = vlaneseq
    %v200 = vshrl.u32 %v199, 7
    %v201 = vsub.s32 %v198, %v200
    %v202 = vrot.slane %v89, %v201
    %vm203 = vcmask 261312
    %v204 = vsel %vm203, %v202, %v197
    %v205 = vlaneseq
    %v206 = vshrl.u32 %v205, 7
    %v207 = vsub.s32 %v179, %v206
    %v208 = vrot.slane %v91, %v207
    %v209 = vlaneseq
    %v210 = vshrl.u32 %v209, 7
    %v211 = vsub.s32 %v184, %v210
    %v212 = vrot.slane %v93, %v211
    %v213 = vsel %vm189, %v212, %v208
    %v214 = vlaneseq
    %v215 = vshrl.u32 %v214, 7
    %v216 = vsub.s32 %v191, %v215
    %v217 = vrot.slane %v95, %v216
    %v218 = vsel %vm196, %v217, %v213
    %v219 = vlaneseq
    %v220 = vshrl.u32 %v219, 7
    %v221 = vsub.s32 %v198, %v220
    %v222 = vrot.slane %v97, %v221
    %v223 = vsel %vm203, %v222, %v218
    %v224 = vlaneseq
    %v225 = vshrl.u32 %v224, 7
    %v226 = vsub.s32 %v179, %v225
    %v227 = vrot.slane %v99, %v226
    %v228 = vlaneseq
    %v229 = vshrl.u32 %v228, 7
    %v230 = vsub.s32 %v184, %v229
    %v231 = vrot.slane %v101, %v230
    %v232 = vsel %vm189, %v231, %v227
    %v233 = vlaneseq
    %v234 = vshrl.u32 %v233, 7
    %v235 = vsub.s32 %v191, %v234
    %v236 = vrot.slane %v103, %v235
    %v237 = vsel %vm196, %v236, %v232
    %v238 = vlaneseq
    %v239 = vshrl.u32 %v238, 7
    %v240 = vsub.s32 %v198, %v239
    %v241 = vrot.slane %v105, %v240
    %v242 = vsel %vm203, %v241, %v237
    %v243 = vlaneseq
    %v244 = vshrl.u32 %v243, 7
    %v245 = vsub.s32 %v179, %v244
    %v246 = vrot.slane %v107, %v245
    %v247 = vlaneseq
    %v248 = vshrl.u32 %v247, 7
    %v249 = vsub.s32 %v184, %v248
    %v250 = vrot.slane %v109, %v249
    %v251 = vsel %vm189, %v250, %v246
    %v252 = vlaneseq
    %v253 = vshrl.u32 %v252, 7
    %v254 = vsub.s32 %v191, %v253
    %v255 = vrot.slane %v111, %v254
    %v256 = vsel %vm196, %v255, %v251
    %v257 = vlaneseq
    %v258 = vshrl.u32 %v257, 7
    %v259 = vsub.s32 %v198, %v258
    %v260 = vrot.slane %v113, %v259
    %v261 = vsel %vm203, %v260, %v256
    %v262 = vlaneseq
    %v263 = vshrl.u32 %v262, 7
    %v264 = vsub.s32 %v179, %v263
    %v265 = vrot.slane %v115, %v264
    %v266 = vlaneseq
    %v267 = vshrl.u32 %v266, 7
    %v268 = vsub.s32 %v184, %v267
    %v269 = vrot.slane %v117, %v268
    %v270 = vsel %vm189, %v269, %v265
    %v271 = vlaneseq
    %v272 = vshrl.u32 %v271, 7
    %v273 = vsub.s32 %v191, %v272
    %v274 = vrot.slane %v119, %v273
    %v275 = vsel %vm196, %v274, %v270
    %v276 = vlaneseq
    %v277 = vshrl.u32 %v276, 7
    %v278 = vsub.s32 %v198, %v277
    %v279 = vrot.slane %v121, %v278
    %v280 = vsel %vm203, %v279, %v275
    %v281 = vlaneseq
    %v282 = vshrl.u32 %v281, 7
    %v283 = vsub.s32 %v179, %v282
    %v284 = vrot.slane %v123, %v283
    %v285 = vlaneseq
    %v286 = vshrl.u32 %v285, 7
    %v287 = vsub.s32 %v184, %v286
    %v288 = vrot.slane %v125, %v287
    %v289 = vsel %vm189, %v288, %v284
    %v290 = vlaneseq
    %v291 = vshrl.u32 %v290, 7
    %v292 = vsub.s32 %v191, %v291
    %v293 = vrot.slane %v127, %v292
    %v294 = vsel %vm196, %v293, %v289
    %v295 = vlaneseq
    %v296 = vshrl.u32 %v295, 7
    %v297 = vsub.s32 %v198, %v296
    %v298 = vrot.slane %v129, %v297
    %v299 = vsel %vm203, %v298, %v294
    %v300 = vlaneseq
    %v301 = vshrl.u32 %v300, 7
    %v302 = vsub.s32 %v179, %v301
    %v303 = vrot.slane %v131, %v302
    %v304 = vlaneseq
    %v305 = vshrl.u32 %v304, 7
    %v306 = vsub.s32 %v184, %v305
    %v307 = vrot.slane %v133, %v306
    %v308 = vsel %vm189, %v307, %v303
    %v309 = vlaneseq
    %v310 = vshrl.u32 %v309, 7
    %v311 = vsub.s32 %v191, %v310
    %v312 = vrot.slane %v135, %v311
    %v313 = vsel %vm196, %v312, %v308
    %v314 = vlaneseq
    %v315 = vshrl.u32 %v314, 7
    %v316 = vsub.s32 %v198, %v315
    %v317 = vrot.slane %v137, %v316
    %v318 = vsel %vm203, %v317, %v313
    %v319 = vlaneseq
    %v320 = vshrl.u32 %v319, 7
    %v321 = vsub.s32 %v179, %v320
    %v322 = vrot.slane %v139, %v321
    %v323 = vlaneseq
    %v324 = vshrl.u32 %v323, 7
    %v325 = vsub.s32 %v184, %v324
    %v326 = vrot.slane %v141, %v325
    %v327 = vsel %vm189, %v326, %v322
    %v328 = vlaneseq
    %v329 = vshrl.u32 %v328, 7
    %v330 = vsub.s32 %v191, %v329
    %v331 = vrot.slane %v143, %v330
    %v332 = vsel %vm196, %v331, %v327
    %v333 = vlaneseq
    %v334 = vshrl.u32 %v333, 7
    %v335 = vsub.s32 %v198, %v334
    %v336 = vrot.slane %v145, %v335
    %v337 = vsel %vm203, %v336, %v332
    %vm338 = vcmask 1041409
    %v339 = vsel %vm338, %v223, %v204
    %vm340 = vcmask 1042434
    %v341 = vsel %vm340, %v242, %v339
    %vm342 = vcmask 1043459
    %v343 = vsel %vm342, %v261, %v341
    %vm344 = vcmask 1044484
    %v345 = vsel %vm344, %v280, %v343
    %vm346 = vcmask 1045509
    %v347 = vsel %vm346, %v299, %v345
    %vm348 = vcmask 1046534
    %v349 = vsel %vm348, %v318, %v347
    %vm350 = vcmask 1047559
    %v351 = vsel %vm350, %v337, %v349
    %v353 = vadd.f32 %v49, %v351
    %vm354 = vcmask 261120
    %355 = vst.msk [vmem:[#allocation2] sm:$0xff] %vm354, %v353
    // Predicated region
    $region26: #{tpu_custom_call.1} parent=1 // pred_check
      %p356 = pneg %p43
    $region27: #{tpu_custom_call.1} parent=1 // pred_check_branch
      %358 = sbr.rel (%p356) target = $region29
    $region28: #{tpu_custom_call.1} parent=1 // pred_region
      %v359 = vld [vmem:[#allocation2] sm:$0xff]
      %v360 = vld [vmem:[#allocation6] sm:$0xff]
      %v361 = vld [vmem:[#allocation6 + $0x8] sm:$0xff]
      %v362 = vld [vmem:[#allocation6 + $0x10] sm:$0xff]
      %v363 = vld [vmem:[#allocation6 + $0x18] sm:$0xff]
      %v364 = vld [vmem:[%s2] sm:$0x1]
      %v366 = vlaneseq
      %v367 = vshrl.u32 %v366, 7
      %v368 = vsub.s32 0, %v367
      %v369 = vrot.slane %v364, %v368
      %v372 = vsel %vm354, %v359, 0
      %374 = vmatprep.subr.mxu0 0.0
      %375 = vmatpush1.msra.mxu0 0.0
      %376 = vmatprep.subr.mxu0 0.0
      %377 = vmatpush1.msra.mxu0 0.0
      %378 = vmatprep.subr.mxu0 0.0
      %379 = vmatpush1.msra.mxu0 0.0
      %380 = vmatprep.subr.mxu0 0.0
      %381 = vmatpush1.msra.mxu0 0.0
      %382 = vmatprep.subr.mxu0 0.0
      %383 = vmatpush1.msra.mxu0 0.0
      %384 = vmatprep.subr.mxu0 0.0
      %385 = vmatpush1.msra.mxu0 0.0
      %386 = vmatprep.subr.mxu0 0.0
      %387 = vmatpush1.msra.mxu0 0.0
      %388 = vmatprep.subr.mxu0 0.0
      %389 = vmatpush1.msra.mxu0 0.0
      %390 = vmatprep.subr.mxu0 0.0
      %391 = vmatpush1.msra.mxu0 0.0
      %392 = vmatprep.subr.mxu0 0.0
      %393 = vmatpush1.msra.mxu0 0.0
      %394 = vmatprep.subr.mxu0 0.0
      %395 = vmatpush1.msra.mxu0 0.0
      %396 = vmatprep.subr.mxu0 0.0
      %397 = vmatpush1.msra.mxu0 0.0
      %398 = vmatprep.subr.mxu0 0.0
      %399 = vmatpush1.msra.mxu0 %v363
      %400 = vmatprep.subr.mxu0 0.0
      %401 = vmatpush1.msra.mxu0 %v362
      %402 = vmatprep.subr.mxu0 0.0
      %403 = vmatpush1.msra.mxu0 %v361
      %404 = vmatprep.subr.mxu0 0.0
      %405 = vmatpush1.msra.mxu0 %v360
      %406 = vmatprep.subr.mxu0 0.0
      %407 = vmatpush2.msra.mxu0 0.0
      %408 = vmatprep.subr.mxu0 0.0
      %409 = vmatpush2.msra.mxu0 0.0
      %410 = vmatprep.subr.mxu0 0.0
      %411 = vmatpush2.msra.mxu0 0.0
      %412 = vmatprep.subr.mxu0 0.0
      %413 = vmatpush2.msra.mxu0 0.0
      %414 = vmatprep.subr.mxu0 0.0
      %415 = vmatpush2.msra.mxu0 0.0
      %416 = vmatprep.subr.mxu0 0.0
      %417 = vmatpush2.msra.mxu0 0.0
      %418 = vmatprep.subr.mxu0 0.0
      %419 = vmatpush2.msra.mxu0 0.0
      %420 = vmatprep.subr.mxu0 0.0
      %421 = vmatpush2.msra.mxu0 0.0
      %422 = vmatprep.subr.mxu0 0.0
      %423 = vmatpush2.msra.mxu0 0.0
      %424 = vmatprep.subr.mxu0 0.0
      %425 = vmatpush2.msra.mxu0 0.0
      %426 = vmatprep.subr.mxu0 0.0
      %427 = vmatpush2.msra.mxu0 0.0
      %428 = vmatprep.subr.mxu0 0.0
      %429 = vmatpush2.msra.mxu0 0.0
      %430 = vmatprep.subr.mxu0 0.0
      %431 = vmatpush2.msra.mxu0 0.0
      %432 = vmatprep.subr.mxu0 0.0
      %433 = vmatpush2.msra.mxu0 0.0
      %434 = vmatprep.subr.mxu0 0.0
      %435 = vmatpush2.msra.mxu0 0.0
      %436 = vmatprep.subr.mxu0 0.0
      %437 = vmatpush2.msra.mxu0 0.0
      %438 = vmatprep.mubr.f32.mxu0 0.0
      %439 = vmatmul.mubr.f32.gmra.mxu0 %v372
      %v440 = vpop.f32.mrf.mxu0
      %v441 = vadd.f32 %v369, %v440
      %v442 = vpop.f32.mrf.mxu0
      %443 = vdwg.mxu0
      %444 = vst [vmem:[#allocation8] sm:$0xff] %v441
    $region29: #{tpu_custom_call.1} parent=1 // pred_fallthru
      _
    // Predicated region
    $region30: #{tpu_custom_call.1} parent=1 // pred_check
      _
    $region31: #{tpu_custom_call.1} parent=1 // pred_check_branch
      %446 = sbr.rel (0) target = $region33
    $region32: #{tpu_custom_call.1} parent=1 // pred_region
      %s448 = ssub.s32 128, 128
      %449 = vsyncadd [#allocation5], %s448
      %s451 = sshll.u32 [#allocation8], 4
      %s452 = int_to_ptr.vmem [resolvable:$true] %s451
      %454 = dma.vmem_to_hbm [thread:$0]  %s452, 128, %s3, [#allocation5]
    $region33: #{tpu_custom_call.1} parent=1 // pred_fallthru
      _
    // Predicated region
    $region34: #{tpu_custom_call.1} parent=1 // pred_check
      _
    $region35: #{tpu_custom_call.1} parent=1 // pred_check_branch
      %456 = sbr.rel (0) target = $region37
    $region36: #{tpu_custom_call.1} parent=1 // pred_region
      %457 = dma.done [#allocation5], 128
    $region37: #{tpu_custom_call.1} parent=1 // pred_fallthru
      _
    %458 = vsyncpa [#allocation4], 1
    %459 = vsyncpa [#allocation7], 1
    %460 = vsyncpa [#allocation5], 1

</llo_original>
